<compile_context>
chip_gen: v7x
topology: tpu7x:2x2x1
jax: 0.10.0
libtpu: 0.0.40
codegen_flags: <defaults>
</compile_context>

<pallas_src>
import jax
import jax.numpy as jnp
from jax.experimental import pallas as pl
from jax.experimental.pallas import tpu as pltpu

_LANE = 128
_COLS = 8 * _LANE                 # 1024-wide, lane-dense blocks
_MAX_BLOCK_ROWS = 1024            # 1024 x 1024 x 4 B = 4 MiB per buffer
_VMEM_LIMIT = 40 * 1024 * 1024    # 2x(in) + 2x(out) 4 MiB buffers + headroom; < 64 MiB (v7x/TC)


# ---------------------------------------------------------------------------
# Kernel
# ---------------------------------------------------------------------------
def _cast_kernel(x_ref, o_ref):
    # Element-wise cast of the whole tile; float -> int truncates toward zero,
    # matching torch.Tensor.to(torch.long).
    o_ref[...] = x_ref[...].astype(o_ref.dtype)


# ---------------------------------------------------------------------------
# Tiled 2-D cast
# ---------------------------------------------------------------------------
def _cast_2d(x2, out_dtype):
    """Element-wise cast of a 2-D (rows, cols) array via a row-tiled grid."""
    rows, cols = x2.shape

    if rows <= 8:
        block_rows = rows                 # full-extent rows dim: exempt from 8-divisibility
    elif rows <= 2 * _MAX_BLOCK_ROWS:
        # Ensure >= 2 grid steps so the "parallel" axis can be split across the
        # two TensorCores of a v7x chip (no-op cost on v5e/v6e).
        block_rows = min(_MAX_BLOCK_ROWS, 8 * pl.cdiv(pl.cdiv(rows, 2), 8))
    else:
        block_rows = _MAX_BLOCK_ROWS

    grid = pl.cdiv(rows, block_rows)      # last block may overhang; writes are masked

    return pl.pallas_call(
        _cast_kernel,
        out_shape=jax.ShapeDtypeStruct((rows, cols), out_dtype),
        grid=(grid,),
        in_specs=[pl.BlockSpec((block_rows, cols), lambda i: (i, 0))],
        out_specs=pl.BlockSpec((block_rows, cols), lambda i: (i, 0)),
        compiler_params=pltpu.CompilerParams(
            dimension_semantics=("parallel",),
            vmem_limit_bytes=_VMEM_LIMIT,
        ),
    )(x2)


# ---------------------------------------------------------------------------
# pallas_call wrapper (the forward pass)
# ---------------------------------------------------------------------------
def identity_cond_stage(x, out_dtype=jnp.int32):
    """x.to(torch.long) equivalent as a Pallas TPU streaming-cast kernel.

    TODO(synk): torch.long is int64; TPU vector units have no native 64-bit
    lanes and JAX defaults to 32-bit ints, so int32 is produced here.
    """
    orig_shape = x.shape
    n = x.size
    if n == 0:
        return x.astype(out_dtype)        # zero-size guard: no grid to run

    flat = x.reshape(-1)                  # bitcast-style reshape for default layouts
    n_main = (n // _COLS) * _COLS
    rem = n - n_main

    parts = []
    if n_main:
        main = _cast_2d(flat[:n_main].reshape(n_main // _COLS, _COLS), out_dtype)
        parts.append(main.reshape(-1))
    if rem:
        # <1024-element, non-lane-aligned tail: single full-extent (1, rem) block
        # (both dims full extent -> exempt from the (8, 128) rule).
        tail = _cast_2d(flat[n_main:].reshape(1, rem), out_dtype)
        parts.append(tail.reshape(-1))

    out = parts[0] if len(parts) == 1 else jnp.concatenate(parts)
    return out.reshape(orig_shape)


# ---------------------------------------------------------------------------
# Module wrapper mirroring the PyTorch class
# ---------------------------------------------------------------------------
class IdentityCondStagePallas:
    def __init__(self, input_size, **kwargs):
        self.input_size = input_size

    def __call__(self, x, *args, **kwargs):
        return identity_cond_stage(x)


if __name__ == "__main__":
    key = jax.random.PRNGKey(0)
    stage = IdentityCondStagePallas(input_size=16)

    # Main test: (batch=2, channels=4, spatial=16x16) floats with both signs
    # (checks truncate-toward-zero). 2048 elements -> exact lane-aligned path.
    x = jax.random.normal(key, (2, 4, 16, 16), jnp.float32) * 7.0
    out = jax.block_until_ready(stage(x))
    ref = x.astype(jnp.int32)
    assert out.shape == x.shape, out.shape
    assert out.dtype == jnp.int32, out.dtype
    assert jnp.array_equal(out, ref), "cast mismatch vs reference (aligned path)"

    # Ragged test: 1571 elements -> exercises aligned-prefix + unaligned-tail path.
    key2 = jax.random.PRNGKey(1)
    y = jax.random.normal(key2, (1571,), jnp.float32) * 5.0
    out_y = jax.block_until_ready(stage(y))
    assert out_y.shape == y.shape and out_y.dtype == jnp.int32
    assert jnp.array_equal(out_y, y.astype(jnp.int32)), "cast mismatch (ragged path)"

    print("KERNEL_OK")
</pallas_src>

<mosaic_0001>
module attributes {stable_mosaic.version = 11 : i64} {
  func.func @_cast_kernel(%arg0: i32, %arg1: memref<2x1024xf32, #tpu.memory_space<vmem>>, %arg2: memref<2x1024xi32, #tpu.memory_space<vmem>>) attributes {dimension_semantics = [#tpu.dimension_semantics<parallel>], iteration_bounds = array<i64: 1>, scalar_prefetch = 0 : i64, scratch_operands = 0 : i64, tpu.core_type = #tpu.core_type<tc>, window_params = [{transform_indices = @transform_0, window_bounds = array<i64: 2, 1024>}, {transform_indices = @transform_1, window_bounds = array<i64: 2, 1024>}]} {
    %c0 = arith.constant 0 : index
    %c0_0 = arith.constant 0 : index
    %0 = vector.load %arg1[%c0, %c0_0] : memref<2x1024xf32, #tpu.memory_space<vmem>>, vector<2x1024xf32>
    %1 = arith.fptosi %0 : vector<2x1024xf32> to vector<2x1024xi32>
    %c0_1 = arith.constant 0 : index
    %c0_2 = arith.constant 0 : index
    %2 = vector.load %arg2[%c0_1, %c0_2] : memref<2x1024xi32, #tpu.memory_space<vmem>>, vector<2x1024xi32>
    tpu.vector_store %arg2[%c0_1, %c0_2], %1 {strides = array<i32>} : memref<2x1024xi32, #tpu.memory_space<vmem>>, vector<2x1024xi32>,
    return
  }
  func.func @transform_0(%arg0: i32) -> (i32, i32) {
    %c0_i32 = arith.constant 0 : i32
    %c0_i32_0 = arith.constant 0 : i32
    return %arg0, %c0_i32 : i32, i32
  }
  func.func @transform_1(%arg0: i32) -> (i32, i32) {
    %c0_i32 = arith.constant 0 : i32
    %c0_i32_0 = arith.constant 0 : i32
    return %arg0, %c0_i32 : i32, i32
  }
}

</mosaic_0001>

<llo_original>
// kernel: tpu_custom_call.1
$region0: #{tpu_custom_call.1}
  #allocation0 [shape = 'u32[]', space=smem, size = 0x4, offset = 0x4, fixed_abs, tag = 'smem constant byte address 0x4 - core index']
  #allocation1 [shape = 'u32[144,128]{1,0:T(1,128)}', space=vmem, size = 0x12000, scoped, tag = 'internal scratch']
  %s0 = inlined_call_operand.hbm [shape: f32[2,1024], index: 0, kind: input, shape index: {}]
  %s1 = inlined_call_operand.hbm [shape: s32[2,1024], index: 1, kind: output, shape index: {}]
  %s2 = sld [smem:[#allocation0]]
  $region18: #{tpu_custom_call.1} parent=0
    _
  %s4 = ssub.s32 1, %s2
  %s5 = scalar_select 0, %s4, %s2
  $region1: #{tpu_custom_call.1} parent=0
    #allocation2 [shape = 'u8[8192]{0}', space=vmem, size = 0x2000, scoped, tag = 'input window, operand 0, single buffered']
    #allocation3 [shape = 's32[1]{0}', space=sflag, size = 0x4, scoped, tag = 'scoped memory for tpu_custom_call.1']
    #allocation4 [shape = 's32[1]{0}', space=sflag, size = 0x4, scoped, tag = 'scoped memory for tpu_custom_call.1']
    #allocation5 [shape = 'u8[8192]{0}', space=vmem, size = 0x2000, scoped, tag = 'output window, operand 0, single buffered']
    %6 = vsyncpa [#allocation3], 0
    %7 = vsyncpa [#allocation4], 0
    // Predicated region
    $region2: #{tpu_custom_call.1} parent=1 // pred_check
      _
    $region3: #{tpu_custom_call.1} parent=1 // pred_check_branch
      %9 = sbr.rel (0) target = $region5
    $region4: #{tpu_custom_call.1} parent=1 // pred_region
      %s11 = ssub.s32 256, 256
      %12 = vsyncadd [#allocation3], %s11
      %s14 = sshll.u32 [#allocation2], 4
      %s15 = int_to_ptr.vmem [resolvable:$true] %s14
      %17 = dma.hbm_to_vmem [thread:$0]  %s0, 256, %s15, [#allocation3]
    $region5: #{tpu_custom_call.1} parent=1 // pred_fallthru
      _
    // Predicated region
    $region6: #{tpu_custom_call.1} parent=1 // pred_check
      _
    $region7: #{tpu_custom_call.1} parent=1 // pred_check_branch
      %19 = sbr.rel (0) target = $region9
    $region8: #{tpu_custom_call.1} parent=1 // pred_region
      %20 = dma.done [#allocation3], 256
    $region9: #{tpu_custom_call.1} parent=1 // pred_fallthru
      _
    %v21 = vld [vmem:[#allocation2] sm:$0xff]
    %v22 = vld [vmem:[#allocation2 + $0x8] sm:$0xff]
    %v23 = vcvt.f32.s32.to.zero.pseudo %v21
    %v24 = vcvt.f32.s32.to.zero.pseudo %v22
    %25 = vst [vmem:[#allocation5] sm:$0xff] %v23
    %26 = vst [vmem:[#allocation5 + $0x8] sm:$0xff] %v24
    // Predicated region
    $region10: #{tpu_custom_call.1} parent=1 // pred_check
      _
    $region11: #{tpu_custom_call.1} parent=1 // pred_check_branch
      %28 = sbr.rel (0) target = $region13
    $region12: #{tpu_custom_call.1} parent=1 // pred_region
      %s30 = ssub.s32 256, 256
      %31 = vsyncadd [#allocation4], %s30
      %s33 = sshll.u32 [#allocation5], 4
      %s34 = int_to_ptr.vmem [resolvable:$true] %s33
      %36 = dma.vmem_to_hbm [thread:$0]  %s34, 256, %s1, [#allocation4]
    $region13: #{tpu_custom_call.1} parent=1 // pred_fallthru
      _
    // Predicated region
    $region14: #{tpu_custom_call.1} parent=1 // pred_check
      _
    $region15: #{tpu_custom_call.1} parent=1 // pred_check_branch
      %38 = sbr.rel (0) target = $region17
    $region16: #{tpu_custom_call.1} parent=1 // pred_region
      %39 = dma.done [#allocation4], 256
    $region17: #{tpu_custom_call.1} parent=1 // pred_fallthru
      _
    %40 = vsyncpa [#allocation3], 1
    %41 = vsyncpa [#allocation4], 1

</llo_original>
